<compile_context>
chip_gen: v6e
topology: v6e:2x2x1
jax: 0.10.0
libtpu: 0.0.40
codegen_flags: <defaults>
</compile_context>

<pallas_src>
import functools
import math

import jax
import jax.numpy as jnp
from jax.experimental import pallas as pl
from jax.experimental.pallas import tpu as pltpu


# ------------------------------ helpers ------------------------------------ #

def _round_up(x, m):
    return (x + m - 1) // m * m


def _gelu_tanh_f32(x):
    # TODO(synk): nn.GELU() default is exact-erf GELU; tanh-approx is used here
    # (max abs diff ~3e-4, negligible vs bf16 MXU error) because it maps to one
    # EUP tanh + a few VALU ops instead of a rational erf with a divide.
    c = 0.7978845608028654  # sqrt(2/pi)
    return 0.5 * x * (1.0 + jnp.tanh(c * (x + 0.044715 * (x * x * x))))


# ------------------------------ Pallas kernel ------------------------------ #

def _ffn_kernel(x_ref, w1_ref, b1_ref, w2_ref, b2_ref, o_ref, *, compute_dtype):
    # x_ref : (C, T)   one (batch, HW-tile) slab of pixels, channels on sublanes
    # w1_ref: (Ch, C)  compute_dtype      b1_ref: (Ch, 1) f32
    # w2_ref: (C, Ch)  compute_dtype      b2_ref: (C, 1)  f32
    # o_ref : (C, T)
    x = x_ref[...].astype(compute_dtype)                                  # no-op if bf16 input
    h = jnp.dot(w1_ref[...], x, preferred_element_type=jnp.float32)       # MXU, f32 acc
    h = _gelu_tanh_f32(h + b1_ref[...])                                   # f32 VPU/EUP (v5e-safe)
    y = jnp.dot(w2_ref[...], h.astype(compute_dtype),
                preferred_element_type=jnp.float32)                       # MXU, f32 acc
    o_ref[...] = (y + b2_ref[...]).astype(o_ref.dtype)


# ------------------------------ wrapper ------------------------------------ #

def feed_forward(x_nchw, w1, b1, w2, b2, *,
                 tile_hw=None,
                 compute_dtype=jnp.bfloat16,
                 out_dtype=None):
    """FeedForward forward pass.

    x_nchw: (B, dim, H, W), any float dtype (bf16 recommended: halves HBM I/O)
    w1: (dim*mult, dim) == torch conv1.weight[:, :, 0, 0]   b1: (dim*mult,)
    w2: (dim, dim*mult) == torch conv2.weight[:, :, 0, 0]   b2: (dim,)
    Dropout(p=0.0) is the identity. Output dtype follows the input dtype.
    """
    B, C, H, W = x_nchw.shape
    Ch = w1.shape[0]
    assert w1.shape == (Ch, C) and w2.shape == (C, Ch)
    assert b1.shape == (Ch,) and b2.shape == (C,)
    HW = H * W
    out_dtype = x_nchw.dtype if out_dtype is None else out_dtype

    # 1x1 conv == per-pixel channel matmul: view x as (B, C, H*W). The reshape is
    # free (no data movement) and H*W sits on the lane axis -> no transposes.
    x3 = x_nchw.reshape(B, C, HW)

    # HW tile: multiple of 128 (lane-dense, unmasked vst), big enough to amortize
    # per-step overhead, small enough that B * n_hw >= ~8 grid steps so each
    # TensorCore (two on v7x) gets several pipelined steps.
    if tile_hw is None:
        want_tiles = max(1, -(-8 // B))                      # ceil(8 / B)
        tile_hw = _round_up(max(1, -(-HW // want_tiles)), 128)
        tile_hw = max(128, min(1024, tile_hw))
    assert tile_hw % 128 == 0
    HWp = _round_up(HW, tile_hw)
    if HWp != HW:                                            # pad only when needed
        x3 = jnp.pad(x3, ((0, 0), (0, 0), (0, HWp - HW)))
    n_hw = HWp // tile_hw

    # Weights bf16 for the MXU (tiny, VMEM-resident for the whole grid); biases
    # stay f32 as (N, 1) columns that lane-broadcast against (N, tile_hw) tiles.
    w1_c = w1.astype(compute_dtype)
    w2_c = w2.astype(compute_dtype)
    b1_c = b1.astype(jnp.float32).reshape(Ch, 1)
    b2_c = b2.astype(jnp.float32).reshape(C, 1)

    # Generation-aware VMEM cap: v7x has 64 MiB physical (v5e/v6e: 128 MiB).
    x_bytes = jnp.dtype(x3.dtype).itemsize
    o_bytes = jnp.dtype(out_dtype).itemsize
    w_bytes = jnp.dtype(compute_dtype).itemsize
    est = (2 * C * tile_hw * x_bytes            # x double buffer
           + 2 * C * tile_hw * o_bytes          # out double buffer
           + 2 * Ch * C * w_bytes               # w1 + w2 (resident)
           + (Ch + C) * 4                       # biases
           + 2 * Ch * tile_hw * 4)              # hidden activation scratch (headroom)
    try:
        vmem_cap = pltpu.get_tpu_info().vmem_capacity_bytes
    except Exception:
        vmem_cap = 64 * 1024 * 1024
    vmem_limit = int(min(vmem_cap * 3 // 4, max(16 * 1024 * 1024, 4 * est)))

    out = pl.pallas_call(
        functools.partial(_ffn_kernel, compute_dtype=compute_dtype),
        out_shape=jax.ShapeDtypeStruct((B, C, HWp), out_dtype),
        grid=(B, n_hw),
        in_specs=[
            pl.BlockSpec((None, C, tile_hw), lambda b, t: (b, 0, t)),  # x tile (streamed)
            pl.BlockSpec((Ch, C), lambda b, t: (0, 0)),                # w1 (VMEM-resident)
            pl.BlockSpec((Ch, 1), lambda b, t: (0, 0)),                # b1
            pl.BlockSpec((C, Ch), lambda b, t: (0, 0)),                # w2 (VMEM-resident)
            pl.BlockSpec((C, 1), lambda b, t: (0, 0)),                 # b2
        ],
        out_specs=pl.BlockSpec((None, C, tile_hw), lambda b, t: (b, 0, t)),
        compiler_params=pltpu.CompilerParams(
            dimension_semantics=("parallel", "parallel"),              # megacore-shardable
            vmem_limit_bytes=vmem_limit,
        ),
    )(x3, w1_c, b1_c, w2_c, b2_c)

    y3 = out[:, :, :HW] if HWp != HW else out
    return y3.reshape(B, C, H, W)


# ------------------------------ main ---------------------------------------- #

if __name__ == "__main__":
    # FeedForward(dim=64, mult=4) on a (2, 64, 16, 16) NCHW input.
    B, dim, H, W = 2, 64, 16, 16
    mult = 4
    hidden = dim * mult

    key = jax.random.PRNGKey(0)
    kx, k1, k2, k3, k4 = jax.random.split(key, 5)
    x = jax.random.normal(kx, (B, dim, H, W), jnp.float32)
    # Torch Conv2d(kernel_size=1) weight layout: (out_channels, in_channels).
    w1 = jax.random.normal(k1, (hidden, dim), jnp.float32) / math.sqrt(dim)
    b1 = jax.random.normal(k2, (hidden,), jnp.float32) * 0.01
    w2 = jax.random.normal(k3, (dim, hidden), jnp.float32) / math.sqrt(hidden)
    b2 = jax.random.normal(k4, (dim,), jnp.float32) * 0.01

    # bf16 activations at the kernel boundary (halves x/out HBM traffic); in a
    # real CvT the surrounding layers run bf16 so this cast fuses upstream.
    x_bf16 = x.astype(jnp.bfloat16)

    fwd = jax.jit(feed_forward)
    y = fwd(x_bf16, w1, b1, w2, b2)
    jax.block_until_ready(y)
    assert y.shape == (B, dim, H, W)

    # Plain-JAX f32 reference (exact-erf GELU). Loose tolerance: kernel uses bf16
    # activations/weights at the MXU (f32 accumulation) and tanh-approx GELU.
    def ref(x_in):
        x2 = x_in.reshape(B, dim, H * W)
        h = jnp.einsum("oc,bcx->box", w1, x2, precision="highest") + b1[None, :, None]
        h = jax.nn.gelu(h, approximate=False)
        y2 = jnp.einsum("oc,bcx->box", w2, h, precision="highest") + b2[None, :, None]
        return y2.reshape(B, dim, H, W)

    y_ref = ref(x)
    err = float(jnp.max(jnp.abs(y.astype(jnp.float32) - y_ref)))
    assert math.isfinite(err) and err < 0.1, f"max abs err too large: {err}"
    print("KERNEL_OK")
</pallas_src>

<mosaic_0001>
module attributes {stable_mosaic.version = 11 : i64} {
  func.func @_ffn_kernel(%arg0: i32, %arg1: i32, %arg2: memref<1x64x128xbf16, #tpu.memory_space<vmem>>, %arg3: memref<256x64xbf16, #tpu.memory_space<vmem>>, %arg4: memref<256x1xf32, #tpu.memory_space<vmem>>, %arg5: memref<64x256xbf16, #tpu.memory_space<vmem>>, %arg6: memref<64x1xf32, #tpu.memory_space<vmem>>, %arg7: memref<1x64x128xbf16, #tpu.memory_space<vmem>>) attributes {dimension_semantics = [#tpu.dimension_semantics<parallel>, #tpu.dimension_semantics<parallel>], iteration_bounds = array<i64: 2, 2>, scalar_prefetch = 0 : i64, scratch_operands = 0 : i64, tpu.core_type = #tpu.core_type<tc>, window_params = [{transform_indices = @transform_0, window_bounds = array<i64: 1, 64, 128>}, {pipeline_mode = #tpu.pipeline_mode<synchronous>, transform_indices = @transform_1, window_bounds = array<i64: 256, 64>}, {pipeline_mode = #tpu.pipeline_mode<synchronous>, transform_indices = @transform_2, window_bounds = array<i64: 256, 1>}, {pipeline_mode = #tpu.pipeline_mode<synchronous>, transform_indices = @transform_3, window_bounds = array<i64: 64, 256>}, {pipeline_mode = #tpu.pipeline_mode<synchronous>, transform_indices = @transform_4, window_bounds = array<i64: 64, 1>}, {transform_indices = @transform_5, window_bounds = array<i64: 1, 64, 128>}]} {
    %c0 = arith.constant 0 : index
    %c0_0 = arith.constant 0 : index
    %c0_1 = arith.constant 0 : index
    %0 = vector.load %arg2[%c0, %c0_0, %c0_1] : memref<1x64x128xbf16, #tpu.memory_space<vmem>>, vector<1x64x128xbf16>
    %1 = vector.shape_cast %0 : vector<1x64x128xbf16> to vector<64x128xbf16>
    %c0_2 = arith.constant 0 : index
    %c0_3 = arith.constant 0 : index
    %2 = vector.load %arg3[%c0_2, %c0_3] : memref<256x64xbf16, #tpu.memory_space<vmem>>, vector<256x64xbf16>
    %cst = arith.constant dense<0.000000e+00> : vector<256x128xf32>
    %3 = tpu.matmul %2, %1, %cst {dimension_numbers = #tpu.dot_dimension_numbers<[1], [0], [0], [1], [0, 0, 1, 1], [], []>} : vector<256x64xbf16>, vector<64x128xbf16>, vector<256x128xf32> -> vector<256x128xf32>
    %c0_4 = arith.constant 0 : index
    %c0_5 = arith.constant 0 : index
    %4 = vector.load %arg4[%c0_4, %c0_5] : memref<256x1xf32, #tpu.memory_space<vmem>>, vector<256x1xf32>
    %5 = vector.broadcast %4 : vector<256x1xf32> to vector<256x128xf32>
    %6 = arith.addf %3, %5 : vector<256x128xf32>
    %cst_6 = arith.constant 5.000000e-01 : f32
    %7 = vector.broadcast %cst_6 : f32 to vector<256x128xf32>
    %8 = arith.mulf %7, %6 : vector<256x128xf32>
    %9 = arith.mulf %6, %6 : vector<256x128xf32>
    %10 = arith.mulf %9, %6 : vector<256x128xf32>
    %cst_7 = arith.constant 4.471500e-02 : f32
    %11 = vector.broadcast %cst_7 : f32 to vector<256x128xf32>
    %12 = arith.mulf %11, %10 : vector<256x128xf32>
    %13 = arith.addf %6, %12 : vector<256x128xf32>
    %cst_8 = arith.constant 0.797884583 : f32
    %14 = vector.broadcast %cst_8 : f32 to vector<256x128xf32>
    %15 = arith.mulf %14, %13 : vector<256x128xf32>
    %16 = math.tanh %15 : vector<256x128xf32>
    %cst_9 = arith.constant 1.000000e+00 : f32
    %17 = vector.broadcast %cst_9 : f32 to vector<256x128xf32>
    %18 = arith.addf %17, %16 : vector<256x128xf32>
    %19 = arith.mulf %8, %18 : vector<256x128xf32>
    %c0_10 = arith.constant 0 : index
    %c0_11 = arith.constant 0 : index
    %20 = vector.load %arg5[%c0_10, %c0_11] : memref<64x256xbf16, #tpu.memory_space<vmem>>, vector<64x256xbf16>
    %21 = arith.truncf %19 : vector<256x128xf32> to vector<256x128xbf16>
    %cst_12 = arith.constant dense<0.000000e+00> : vector<64x128xf32>
    %22 = tpu.matmul %20, %21, %cst_12 {dimension_numbers = #tpu.dot_dimension_numbers<[1], [0], [0], [1], [0, 0, 1, 1], [], []>} : vector<64x256xbf16>, vector<256x128xbf16>, vector<64x128xf32> -> vector<64x128xf32>
    %c0_13 = arith.constant 0 : index
    %c0_14 = arith.constant 0 : index
    %23 = vector.load %arg6[%c0_13, %c0_14] : memref<64x1xf32, #tpu.memory_space<vmem>>, vector<64x1xf32>
    %24 = vector.broadcast %23 : vector<64x1xf32> to vector<64x128xf32>
    %25 = arith.addf %22, %24 : vector<64x128xf32>
    %26 = arith.truncf %25 : vector<64x128xf32> to vector<64x128xbf16>
    %c0_15 = arith.constant 0 : index
    %c0_16 = arith.constant 0 : index
    %c0_17 = arith.constant 0 : index
    %27 = vector.load %arg7[%c0_15, %c0_16, %c0_17] : memref<1x64x128xbf16, #tpu.memory_space<vmem>>, vector<1x64x128xbf16>
    %28 = vector.shape_cast %27 : vector<1x64x128xbf16> to vector<64x128xbf16>
    %29 = vector.shape_cast %26 : vector<64x128xbf16> to vector<1x64x128xbf16>
    tpu.vector_store %arg7[%c0_15, %c0_16, %c0_17], %29 {strides = array<i32>} : memref<1x64x128xbf16, #tpu.memory_space<vmem>>, vector<1x64x128xbf16>,
    return
  }
  func.func @transform_0(%arg0: i32, %arg1: i32) -> (i32, i32, i32) {
    %c0_i32 = arith.constant 0 : i32
    %c0_i32_0 = arith.constant 0 : i32
    return %arg0, %c0_i32, %arg1 : i32, i32, i32
  }
  func.func @transform_1(%arg0: i32, %arg1: i32) -> (i32, i32) {
    %c0_i32 = arith.constant 0 : i32
    %c0_i32_0 = arith.constant 0 : i32
    %c0_i32_1 = arith.constant 0 : i32
    return %c0_i32, %c0_i32_0 : i32, i32
  }
  func.func @transform_2(%arg0: i32, %arg1: i32) -> (i32, i32) {
    %c0_i32 = arith.constant 0 : i32
    %c0_i32_0 = arith.constant 0 : i32
    %c0_i32_1 = arith.constant 0 : i32
    return %c0_i32, %c0_i32_0 : i32, i32
  }
  func.func @transform_3(%arg0: i32, %arg1: i32) -> (i32, i32) {
    %c0_i32 = arith.constant 0 : i32
    %c0_i32_0 = arith.constant 0 : i32
    %c0_i32_1 = arith.constant 0 : i32
    return %c0_i32, %c0_i32_0 : i32, i32
  }
  func.func @transform_4(%arg0: i32, %arg1: i32) -> (i32, i32) {
    %c0_i32 = arith.constant 0 : i32
    %c0_i32_0 = arith.constant 0 : i32
    %c0_i32_1 = arith.constant 0 : i32
    return %c0_i32, %c0_i32_0 : i32, i32
  }
  func.func @transform_5(%arg0: i32, %arg1: i32) -> (i32, i32, i32) {
    %c0_i32 = arith.constant 0 : i32
    %c0_i32_0 = arith.constant 0 : i32
    return %arg0, %c0_i32, %arg1 : i32, i32, i32
  }
}

</mosaic_0001>

<llo_original>
// kernel: feed_forward.1
$region0: #{feed_forward.1}
  #allocation0 [shape = 'u32[]', space=smem, size = 0x4, offset = 0x4, fixed_abs, tag = 'smem constant byte address 0x4 - core index']
  #allocation1 [shape = 'u32[144,128]{1,0:T(1,128)}', space=vmem, size = 0x12000, scoped, tag = 'internal scratch']
  %s0 = inlined_call_operand.vmem [shape: bf16[2,64,256], index: 0, kind: input, shape index: {}]
  %s1 = inlined_call_operand.vmem [shape: bf16[256,64], index: 1, kind: input, shape index: {}]
  %s2 = inlined_call_operand.vmem [shape: f32[256,1], index: 2, kind: input, shape index: {}]
  %s3 = inlined_call_operand.vmem [shape: bf16[64,256], index: 3, kind: input, shape index: {}]
  %s4 = inlined_call_operand.vmem [shape: f32[64,1], index: 4, kind: input, shape index: {}]
  %s5 = inlined_call_operand.vmem [shape: bf16[2,64,256], index: 5, kind: output, shape index: {}]
  %s6 = sld [smem:[#allocation0]]
  $region131: #{feed_forward.1} parent=0
    _
  %s8 = ssub.s32 1, %s6
  %s9 = scalar_select 0, %s8, %s6
  $region1: #{feed_forward.1} parent=0
    #allocation2 [shape = 'u8[32768]{0}', space=vmem, size = 0x8000, scoped, tag = 'input window, operand 0']
    #allocation3 [shape = 'u8[32768]{0}', space=vmem, size = 0x8000, scoped, tag = 'output window, operand 0']
    loop: start=0, step=1, limit=6
    $region2: #{feed_forward.1} parent=1 // loop_pre_header
      _
    $region3: #{feed_forward.1} parent=1 // loop_header
      %s11 = sphi 0, %s15
      %p12 = scmp.ge.s32.totalorder %s11, 6
      %s18 = sphi 0, %s30
      %s19 = sphi 0, %s26
      %s20 = sphi 0, %s18
      %s21 = sphi 0, %s19
      %s22 = sphi 0, %s20
      %s23 = sphi 0, %s21
      %s35 = sphi 0, %s37
      %s38 = sphi 0, %s35
      %s39 = sphi 0, %s38
      %s55 = sphi 0, %s39
      %s59 = sphi 0, %s59
      %s61 = sphi 0, %s59
      %s62 = sphi 0, %s61
      %s76 = sphi 0, %s62
      %s80 = sphi 0, %s80
      %s82 = sphi 0, %s80
      %s83 = sphi 0, %s82
      %s97 = sphi 0, %s83
      %s101 = sphi 0, %s101
      %s103 = sphi 0, %s101
      %s104 = sphi 0, %s103
      %s118 = sphi 0, %s104
      %s122 = sphi 0, %s122
      %s124 = sphi 0, %s122
      %s125 = sphi 0, %s124
      %s139 = sphi 0, %s125
      %s147 = sphi 0, %s149
      %s150 = sphi 0, %s147
      %s151 = sphi 0, %s150
      %s167 = sphi 0, %s151
    $region4: #{feed_forward.1} parent=1 // loop_header_branch
      %14 = sbr.rel (%p12) target = $region8
    $region5: #{feed_forward.1} parent=1 // loop_body
      %s16 = ssub.s32 %s11, 1
      %s17 = ssub.s32 %s11, 2
      %s24 = sadd.s32 1, %s19
      %p25 = scmp.ge.s32.totalorder %s24, 2
      %s26 = scalar_select %p25, 0, %s24
      %s27 = sadd.s32 1, %s18
      %s28 = scalar_select %p25, %s27, %s18
      %p29 = scmp.ge.s32.totalorder %s28, 2
      %s30 = scalar_select %p29, 0, %s28
      %s31 = ssub.s32 %s18, %s30
      %s32 = ssub.s32 %s19, %s26
      %s33 = sor.u32 %s31, %s32
      %p34 = scmp.eq.s32.totalorder %s33, 0
      %s36 = sadd.s32 %s35, 1
      %s37 = scalar_select %p34, %s35, %s36
      %p40 = pneg %p34
      %p41 = scmp.eq.s32.totalorder %s11, 3
      %p42 = por %p40, %p41
      %p43 = scmp.ne.s32.totalorder %s35, %s38
      %p44 = scmp.eq.s32.totalorder %s11, 0
      %p45 = por %p43, %p44
      %p46 = scmp.ne.s32.totalorder %s35, %s38
      %p47 = scmp.eq.s32.totalorder %s16, 3
      %p48 = por %p46, %p47
      %p49 = scmp.ne.s32.totalorder %s38, %s39
      %p50 = scmp.eq.s32.totalorder %s16, 0
      %p51 = por %p49, %p50
      %p52 = scmp.ne.s32.totalorder %s38, %s39
      %p53 = scmp.eq.s32.totalorder %s17, 3
      %p54 = por %p52, %p53
      %p56 = scmp.ne.s32.totalorder %s39, %s55
      %p57 = scmp.eq.s32.totalorder %s17, 0
      %p58 = por %p56, %p57
      %s60 = sadd.s32 %s59, 1
      %p63 = scmp.eq.s32.totalorder %s11, 3
      %p64 = scmp.ne.s32.totalorder %s59, %s61
      %p65 = scmp.eq.s32.totalorder %s11, 0
      %p66 = por %p64, %p65
      %p67 = scmp.ne.s32.totalorder %s59, %s61
      %p68 = scmp.eq.s32.totalorder %s16, 3
      %p69 = por %p67, %p68
      %p70 = scmp.ne.s32.totalorder %s61, %s62
      %p71 = scmp.eq.s32.totalorder %s16, 0
      %p72 = por %p70, %p71
      %p73 = scmp.ne.s32.totalorder %s61, %s62
      %p74 = scmp.eq.s32.totalorder %s17, 3
      %p75 = por %p73, %p74
      %p77 = scmp.ne.s32.totalorder %s62, %s76
      %p78 = scmp.eq.s32.totalorder %s17, 0
      %p79 = por %p77, %p78
      %s81 = sadd.s32 %s80, 1
      %p84 = scmp.eq.s32.totalorder %s11, 3
      %p85 = scmp.ne.s32.totalorder %s80, %s82
      %p86 = scmp.eq.s32.totalorder %s11, 0
      %p87 = por %p85, %p86
      %p88 = scmp.ne.s32.totalorder %s80, %s82
      %p89 = scmp.eq.s32.totalorder %s16, 3
      %p90 = por %p88, %p89
      %p91 = scmp.ne.s32.totalorder %s82, %s83
      %p92 = scmp.eq.s32.totalorder %s16, 0
      %p93 = por %p91, %p92
      %p94 = scmp.ne.s32.totalorder %s82, %s83
      %p95 = scmp.eq.s32.totalorder %s17, 3
      %p96 = por %p94, %p95
      %p98 = scmp.ne.s32.totalorder %s83, %s97
      %p99 = scmp.eq.s32.totalorder %s17, 0
      %p100 = por %p98, %p99
      %s102 = sadd.s32 %s101, 1
      %p105 = scmp.eq.s32.totalorder %s11, 3
      %p106 = scmp.ne.s32.totalorder %s101, %s103
      %p107 = scmp.eq.s32.totalorder %s11, 0
      %p108 = por %p106, %p107
      %p109 = scmp.ne.s32.totalorder %s101, %s103
      %p110 = scmp.eq.s32.totalorder %s16, 3
      %p111 = por %p109, %p110
      %p112 = scmp.ne.s32.totalorder %s103, %s104
      %p113 = scmp.eq.s32.totalorder %s16, 0
      %p114 = por %p112, %p113
      %p115 = scmp.ne.s32.totalorder %s103, %s104
      %p116 = scmp.eq.s32.totalorder %s17, 3
      %p117 = por %p115, %p116
      %p119 = scmp.ne.s32.totalorder %s104, %s118
      %p120 = scmp.eq.s32.totalorder %s17, 0
      %p121 = por %p119, %p120
      %s123 = sadd.s32 %s122, 1
      %p126 = scmp.eq.s32.totalorder %s11, 3
      %p127 = scmp.ne.s32.totalorder %s122, %s124
      %p128 = scmp.eq.s32.totalorder %s11, 0
      %p129 = por %p127, %p128
      %p130 = scmp.ne.s32.totalorder %s122, %s124
      %p131 = scmp.eq.s32.totalorder %s16, 3
      %p132 = por %p130, %p131
      %p133 = scmp.ne.s32.totalorder %s124, %s125
      %p134 = scmp.eq.s32.totalorder %s16, 0
      %p135 = por %p133, %p134
      %p136 = scmp.ne.s32.totalorder %s124, %s125
      %p137 = scmp.eq.s32.totalorder %s17, 3
      %p138 = por %p136, %p137
      %p140 = scmp.ne.s32.totalorder %s125, %s139
      %p141 = scmp.eq.s32.totalorder %s17, 0
      %p142 = por %p140, %p141
      %s143 = ssub.s32 %s18, %s30
      %s144 = ssub.s32 %s19, %s26
      %s145 = sor.u32 %s143, %s144
      %p146 = scmp.eq.s32.totalorder %s145, 0
      %s148 = sadd.s32 %s147, 1
      %s149 = scalar_select %p146, %s147, %s148
      %p152 = pneg %p146
      %p153 = scmp.eq.s32.totalorder %s11, 3
      %p154 = por %p152, %p153
      %p155 = scmp.ne.s32.totalorder %s147, %s150
      %p156 = scmp.eq.s32.totalorder %s11, 0
      %p157 = por %p155, %p156
      %p158 = scmp.ne.s32.totalorder %s147, %s150
      %p159 = scmp.eq.s32.totalorder %s16, 3
      %p160 = por %p158, %p159
      %p161 = scmp.ne.s32.totalorder %s150, %s151
      %p162 = scmp.eq.s32.totalorder %s16, 0
      %p163 = por %p161, %p162
      %p164 = scmp.ne.s32.totalorder %s150, %s151
      %p165 = scmp.eq.s32.totalorder %s17, 3
      %p166 = por %p164, %p165
      %p168 = scmp.ne.s32.totalorder %s151, %s167
      %p169 = scmp.eq.s32.totalorder %s17, 0
      %p170 = por %p168, %p169
      %p171 = scmp.le.s32.totalorder 1, %s11
      %p172 = scmp.lt.s32.totalorder %s11, 5
      %p173 = pnand %p171, %p172
      %p174 = pneg %p173
      // Predicated region
      $region9: #{feed_forward.1} parent=5 // pred_check
        _
      $region10: #{feed_forward.1} parent=5 // pred_check_branch
        %176 = sbr.rel (%p173) target = $region12
      $region11: #{feed_forward.1} parent=5 // pred_region
        %s177 = ssub.s32 %s11, 1
        // Predicated region
        $region13: #{feed_forward.1} parent=11 // pred_check
          %p178 = pneg %p72
        $region14: #{feed_forward.1} parent=11 // pred_check_branch
          %180 = sbr.rel (%p178) target = $region16
        $region15: #{feed_forward.1} parent=11 // pred_region
          _
        $region16: #{feed_forward.1} parent=11 // pred_fallthru
          _
        // Predicated region
        $region17: #{feed_forward.1} parent=11 // pred_check
          %p181 = pneg %p93
        $region18: #{feed_forward.1} parent=11 // pred_check_branch
          %183 = sbr.rel (%p181) target = $region20
        $region19: #{feed_forward.1} parent=11 // pred_region
          _
        $region20: #{feed_forward.1} parent=11 // pred_fallthru
          _
        // Predicated region
        $region21: #{feed_forward.1} parent=11 // pred_check
          %p184 = pneg %p114
        $region22: #{feed_forward.1} parent=11 // pred_check_branch
          %186 = sbr.rel (%p184) target = $region24
        $region23: #{feed_forward.1} parent=11 // pred_region
          _
        $region24: #{feed_forward.1} parent=11 // pred_fallthru
          _
        // Predicated region
        $region25: #{feed_forward.1} parent=11 // pred_check
          %p187 = pneg %p135
        $region26: #{feed_forward.1} parent=11 // pred_check_branch
          %189 = sbr.rel (%p187) target = $region28
        $region27: #{feed_forward.1} parent=11 // pred_region
          _
        $region28: #{feed_forward.1} parent=11 // pred_fallthru
          _
      $region12: #{feed_forward.1} parent=5 // pred_fallthru
        _
      %p190 = scmp.lt.s32.totalorder %s11, 4
      // Predicated region
      $region29: #{feed_forward.1} parent=5 // pred_check
        %p191 = pneg %p190
      $region30: #{feed_forward.1} parent=5 // pred_check_branch
        %193 = sbr.rel (%p191) target = $region32
      $region31: #{feed_forward.1} parent=5 // pred_region
        // Predicated region
        $region33: #{feed_forward.1} parent=31 // pred_check
          %p194 = pneg %p45
        $region34: #{feed_forward.1} parent=31 // pred_check_branch
          %196 = sbr.rel (%p194) target = $region36
        $region35: #{feed_forward.1} parent=31 // pred_region
          %s197 = sand.u32 %s35, 1
          %s198 = sand.u32 %s35, 1
          %s199 = smul.addr %s198, 32
          %s200 = scalar_lea.vmem [#allocation2], %s199
          %s201 = smul.addr %s18, 16
          %s202 = sadd.s32 %s19, %s201
          %s203 = smul.addr %s202, 4
          %s204 = scalar_lea.vmem %s0, %s203
          // Predicated region
          $region37: #{feed_forward.1} parent=35 // pred_check
            _
          $region38: #{feed_forward.1} parent=35 // pred_check_branch
            %206 = sbr.rel (0) target = $region40
          $region39: #{feed_forward.1} parent=35 // pred_region
            // Predicated region
            $region41: #{feed_forward.1} parent=39 // pred_check
              _
            $region42: #{feed_forward.1} parent=39 // pred_check_branch
              %208 = sbr.rel target = $region44
            $region43: #{feed_forward.1} parent=39 // pred_region
              // Predicated region
              $region56: #{feed_forward.1} parent=43 // pred_check
                _
              $region57: #{feed_forward.1} parent=43 // pred_check_branch
                %238 = sbr.rel (0) target = $region59
              $region58: #{feed_forward.1} parent=43 // pred_region
                loop: start=0, step=1, limit=1
                $region60: #{feed_forward.1} parent=58 // loop_pre_header
                  _
                $region61: #{feed_forward.1} parent=58 // loop_header
                  %s240 = sphi 0, %s244
                  %p241 = scmp.ge.s32.totalorder %s240, 1
                  %s245 = sphi %s204, %s204
                  %s246 = sphi %s200, %s200
                $region62: #{feed_forward.1} parent=58 // loop_header_branch
                  %243 = sbr.rel (%p241) target = $region66
                $region63: #{feed_forward.1} parent=58 // loop_body
                  _
                $region64: #{feed_forward.1} parent=58 // loop_footer
                  %s244 = sadd.s32 1, %s240
                $region65: #{feed_forward.1} parent=58 // loop_footer_branch
                  %239 = sbr.rel target = $region61
                $region66: #{feed_forward.1} parent=58 // loop_exit
                  _
                %s248 = ssub.s32 16, 1
                loop: start=0, step=1, limit=1
                $region67: #{feed_forward.1} parent=58 // loop_pre_header
                  _
                $region68: #{feed_forward.1} parent=58 // loop_header
                  %s250 = sphi 0, %s254
                  %p251 = scmp.ge.s32.totalorder %s250, 1
                  %s255 = sphi %s204, %s204
                  %s256 = sphi %s200, %s200
                $region69: #{feed_forward.1} parent=58 // loop_header_branch
                  %253 = sbr.rel (%p251) target = $region73
                $region70: #{feed_forward.1} parent=58 // loop_body
                  %v257 = vld [vmem:[%s255] sm:%s248]
                  %258 = vst [vmem:[%s256] sm:%s248] %v257
                  %v259 = vld [vmem:[%s255 + $0x8] sm:%s248]
                  %260 = vst [vmem:[%s256 + $0x4] sm:%s248] %v259
                  %v261 = vld [vmem:[%s255 + $0x10] sm:%s248]
                  %262 = vst [vmem:[%s256 + $0x8] sm:%s248] %v261
                  %v263 = vld [vmem:[%s255 + $0x18] sm:%s248]
                  %264 = vst [vmem:[%s256 + $0xc] sm:%s248] %v263
                  %v265 = vld [vmem:[%s255 + $0x20] sm:%s248]
                  %266 = vst [vmem:[%s256 + $0x10] sm:%s248] %v265
                  %v267 = vld [vmem:[%s255 + $0x28] sm:%s248]
                  %268 = vst [vmem:[%s256 + $0x14] sm:%s248] %v267
                  %v269 = vld [vmem:[%s255 + $0x30] sm:%s248]
                  %270 = vst [vmem:[%s256 + $0x18] sm:%s248] %v269
                  %v271 = vld [vmem:[%s255 + $0x38] sm:%s248]
                  %272 = vst [vmem:[%s256 + $0x1c] sm:%s248] %v271
                $region71: #{feed_forward.1} parent=58 // loop_footer
                  %s254 = sadd.s32 1, %s250
                $region72: #{feed_forward.1} parent=58 // loop_footer_branch
                  %249 = sbr.rel target = $region68
                $region73: #{feed_forward.1} parent=58 // loop_exit
                  _
              $region59: #{feed_forward.1} parent=43 // pred_fallthru
                _
            $region44: #{feed_forward.1} parent=39 // pred_fallthru
              _
            // Predicated region
            $region45: #{feed_forward.1} parent=39 // pred_check
              _
            $region46: #{feed_forward.1} parent=39 // pred_check_branch
              %210 = sbr.rel (0) target = $region48
            $region47: #{feed_forward.1} parent=39 // pred_region
              %s212 = ssub.s32 16, 1
              loop: start=0, step=1, limit=1
              $region49: #{feed_forward.1} parent=47 // loop_pre_header
                _
              $region50: #{feed_forward.1} parent=47 // loop_header
                %s214 = sphi 0, %s218
                %p215 = scmp.ge.s32.totalorder %s214, 1
                %s219 = sphi %s204, %s204
                %s220 = sphi %s200, %s200
              $region51: #{feed_forward.1} parent=47 // loop_header_branch
                %217 = sbr.rel (%p215) target = $region55
              $region52: #{feed_forward.1} parent=47 // loop_body
                %v221 = vld [vmem:[%s219] sm:%s212]
                %222 = vst [vmem:[%s220] sm:%s212] %v221
                %v223 = vld [vmem:[%s219 + $0x8] sm:%s212]
                %224 = vst [vmem:[%s220 + $0x4] sm:%s212] %v223
                %v225 = vld [vmem:[%s219 + $0x10] sm:%s212]
                %226 = vst [vmem:[%s220 + $0x8] sm:%s212] %v225
                %v227 = vld [vmem:[%s219 + $0x18] sm:%s212]
                %228 = vst [vmem:[%s220 + $0xc] sm:%s212] %v227
                %v229 = vld [vmem:[%s219 + $0x20] sm:%s212]
                %230 = vst [vmem:[%s220 + $0x10] sm:%s212] %v229
                %v231 = vld [vmem:[%s219 + $0x28] sm:%s212]
                %232 = vst [vmem:[%s220 + $0x14] sm:%s212] %v231
                %v233 = vld [vmem:[%s219 + $0x30] sm:%s212]
                %234 = vst [vmem:[%s220 + $0x18] sm:%s212] %v233
                %v235 = vld [vmem:[%s219 + $0x38] sm:%s212]
                %236 = vst [vmem:[%s220 + $0x1c] sm:%s212] %v235
              $region53: #{feed_forward.1} parent=47 // loop_footer
                %s218 = sadd.s32 1, %s214
              $region54: #{feed_forward.1} parent=47 // loop_footer_branch
                %213 = sbr.rel target = $region50
              $region55: #{feed_forward.1} parent=47 // loop_exit
                _
            $region48: #{feed_forward.1} parent=39 // pred_fallthru
              _
          $region40: #{feed_forward.1} parent=35 // pred_fallthru
            _
          %273 = vnop
        $region36: #{feed_forward.1} parent=31 // pred_fallthru
          _
      $region32: #{feed_forward.1} parent=5 // pred_fallthru
        _
      %p274 = scmp.le.s32.totalorder 1, %s11
      %p275 = scmp.lt.s32.totalorder %s11, 5
      %p276 = pnand %p274, %p275
      %p277 = pneg %p276
      // Predicated region
      $region74: #{feed_forward.1} parent=5 // pred_check
        _
      $region75: #{feed_forward.1} parent=5 // pred_check_branch
        %279 = sbr.rel (%p276) target = $region77
      $region76: #{feed_forward.1} parent=5 // pred_region
        %s280 = ssub.s32 %s11, 1
        %s281 = sand.u32 %s38, 1
        %s282 = sand.u32 %s38, 1
        %s283 = smul.addr %s282, 32
        %s284 = scalar_lea.vmem [#allocation2], %s283
        // Predicated region
        $region78: #{feed_forward.1} parent=76 // pred_check
          %p285 = pneg %p51
        $region79: #{feed_forward.1} parent=76 // pred_check_branch
          %287 = sbr.rel (%p285) target = $region81
        $region80: #{feed_forward.1} parent=76 // pred_region
          _
        $region81: #{feed_forward.1} parent=76 // pred_fallthru
          _
        %s288 = sand.u32 %s38, 1
        %s289 = sand.u32 %s38, 1
        %s290 = smul.addr %s289, 32
        %s291 = scalar_lea.vmem [#allocation2], %s290
        %p292 = pneg %p51
        %p293 = pneg %p48
        %p294 = pneg %p72
        %p295 = pneg %p69
        %p296 = pneg %p93
        %p297 = pneg %p90
        %p298 = pneg %p114
        %p299 = pneg %p111
        %p300 = pneg %p135
        %p301 = pneg %p132
        %p302 = pneg %p163
        %p303 = pneg %p160
        %s304 = sand.u32 %s150, 1
        %s305 = sand.u32 %s150, 1
        %s306 = smul.addr %s305, 32
        %s307 = scalar_lea.vmem [#allocation3], %s306
        %v309 = vld [vmem:[%s284] sm:$0xf]
        %v310 = vld [vmem:[%s284 + $0x4] sm:$0xf]
        %v311 = vld [vmem:[%s284 + $0x8] sm:$0xf]
        %v312 = vld [vmem:[%s284 + $0xc] sm:$0xf]
        %v313 = vld [vmem:[%s284 + $0x10] sm:$0xf]
        %v314 = vld [vmem:[%s284 + $0x14] sm:$0xf]
        %v315 = vld [vmem:[%s284 + $0x18] sm:$0xf]
        %v316 = vld [vmem:[%s284 + $0x1c] sm:$0xf]
        %v317 = vld [vmem:[%s1] sm:$0xf]
        %v318 = vld [vmem:[%s1 + $0x4] sm:$0xf]
        %v319 = vld [vmem:[%s1 + $0x8] sm:$0xf]
        %v320 = vld [vmem:[%s1 + $0xc] sm:$0xf]
        %v321 = vld [vmem:[%s1 + $0x10] sm:$0xf]
        %v322 = vld [vmem:[%s1 + $0x14] sm:$0xf]
        %v323 = vld [vmem:[%s1 + $0x18] sm:$0xf]
        %v324 = vld [vmem:[%s1 + $0x1c] sm:$0xf]
        %v325 = vld [vmem:[%s1 + $0x20] sm:$0xf]
        %v326 = vld [vmem:[%s1 + $0x24] sm:$0xf]
        %v327 = vld [vmem:[%s1 + $0x28] sm:$0xf]
        %v328 = vld [vmem:[%s1 + $0x2c] sm:$0xf]
        %v329 = vld [vmem:[%s1 + $0x30] sm:$0xf]
        %v330 = vld [vmem:[%s1 + $0x34] sm:$0xf]
        %v331 = vld [vmem:[%s1 + $0x38] sm:$0xf]
        %v332 = vld [vmem:[%s1 + $0x3c] sm:$0xf]
        %v333 = vld [vmem:[%s1 + $0x40] sm:$0xf]
        %v334 = vld [vmem:[%s1 + $0x44] sm:$0xf]
        %v335 = vld [vmem:[%s1 + $0x48] sm:$0xf]
        %v336 = vld [vmem:[%s1 + $0x4c] sm:$0xf]
        %v337 = vld [vmem:[%s1 + $0x50] sm:$0xf]
        %v338 = vld [vmem:[%s1 + $0x54] sm:$0xf]
        %v339 = vld [vmem:[%s1 + $0x58] sm:$0xf]
        %v340 = vld [vmem:[%s1 + $0x5c] sm:$0xf]
        %v341 = vld [vmem:[%s1 + $0x60] sm:$0xf]
        %v342 = vld [vmem:[%s1 + $0x64] sm:$0xf]
        %v343 = vld [vmem:[%s1 + $0x68] sm:$0xf]
        %v344 = vld [vmem:[%s1 + $0x6c] sm:$0xf]
        %v345 = vld [vmem:[%s1 + $0x70] sm:$0xf]
        %v346 = vld [vmem:[%s1 + $0x74] sm:$0xf]
        %v347 = vld [vmem:[%s1 + $0x78] sm:$0xf]
        %v348 = vld [vmem:[%s1 + $0x7c] sm:$0xf]
        %v349 = vld [vmem:[%s2] sm:$0xff]
        %v350 = vld [vmem:[%s2 + $0x8] sm:$0xff]
        %v351 = vld [vmem:[%s2 + $0x10] sm:$0xff]
        %v352 = vld [vmem:[%s2 + $0x18] sm:$0xff]
        %v353 = vld [vmem:[%s2 + $0x20] sm:$0xff]
        %v354 = vld [vmem:[%s2 + $0x28] sm:$0xff]
        %v355 = vld [vmem:[%s2 + $0x30] sm:$0xff]
        %v356 = vld [vmem:[%s2 + $0x38] sm:$0xff]
        %v357 = vld [vmem:[%s2 + $0x40] sm:$0xff]
        %v358 = vld [vmem:[%s2 + $0x48] sm:$0xff]
        %v359 = vld [vmem:[%s2 + $0x50] sm:$0xff]
        %v360 = vld [vmem:[%s2 + $0x58] sm:$0xff]
        %v361 = vld [vmem:[%s2 + $0x60] sm:$0xff]
        %v362 = vld [vmem:[%s2 + $0x68] sm:$0xff]
        %v363 = vld [vmem:[%s2 + $0x70] sm:$0xff]
        %v364 = vld [vmem:[%s2 + $0x78] sm:$0xff]
        %v365 = vld [vmem:[%s2 + $0x80] sm:$0xff]
        %v366 = vld [vmem:[%s2 + $0x88] sm:$0xff]
        %v367 = vld [vmem:[%s2 + $0x90] sm:$0xff]
        %v368 = vld [vmem:[%s2 + $0x98] sm:$0xff]
        %v369 = vld [vmem:[%s2 + $0xa0] sm:$0xff]
        %v370 = vld [vmem:[%s2 + $0xa8] sm:$0xff]
        %v371 = vld [vmem:[%s2 + $0xb0] sm:$0xff]
        %v372 = vld [vmem:[%s2 + $0xb8] sm:$0xff]
        %v373 = vld [vmem:[%s2 + $0xc0] sm:$0xff]
        %v374 = vld [vmem:[%s2 + $0xc8] sm:$0xff]
        %v375 = vld [vmem:[%s2 + $0xd0] sm:$0xff]
        %v376 = vld [vmem:[%s2 + $0xd8] sm:$0xff]
        %v377 = vld [vmem:[%s2 + $0xe0] sm:$0xff]
        %v378 = vld [vmem:[%s2 + $0xe8] sm:$0xff]
        %v379 = vld [vmem:[%s2 + $0xf0] sm:$0xff]
        %v380 = vld [vmem:[%s2 + $0xf8] sm:$0xff]
        %382 = vset.pattern.permute.xlu0 0
        %383 = vperm.xlu0 %382, %v349
        %v384 = vpop.permute.xlu0 %383
        %387 = vset.pattern.permute.xlu0 0
        %388 = vperm.xlu0 %387, %v350
        %v389 = vpop.permute.xlu0 %388
        %392 = vset.pattern.permute.xlu0 0
        %393 = vperm.xlu0 %392, %v351
        %v394 = vpop.permute.xlu0 %393
        %397 = vset.pattern.permute.xlu0 0
        %398 = vperm.xlu0 %397, %v352
        %v399 = vpop.permute.xlu0 %398
        %402 = vset.pattern.permute.xlu0 0
        %403 = vperm.xlu0 %402, %v353
        %v404 = vpop.permute.xlu0 %403
        %407 = vset.pattern.permute.xlu0 0
        %408 = vperm.xlu0 %407, %v354
        %v409 = vpop.permute.xlu0 %408
        %412 = vset.pattern.permute.xlu0 0
        %413 = vperm.xlu0 %412, %v355
        %v414 = vpop.permute.xlu0 %413
        %417 = vset.pattern.permute.xlu0 0
        %418 = vperm.xlu0 %417, %v356
        %v419 = vpop.permute.xlu0 %418
        %422 = vset.pattern.permute.xlu0 0
        %423 = vperm.xlu0 %422, %v357
        %v424 = vpop.permute.xlu0 %423
        %427 = vset.pattern.permute.xlu0 0
        %428 = vperm.xlu0 %427, %v358
        %v429 = vpop.permute.xlu0 %428
        %432 = vset.pattern.permute.xlu0 0
        %433 = vperm.xlu0 %432, %v359
        %v434 = vpop.permute.xlu0 %433
        %437 = vset.pattern.permute.xlu0 0
        %438 = vperm.xlu0 %437, %v360
        %v439 = vpop.permute.xlu0 %438
        %442 = vset.pattern.permute.xlu0 0
        %443 = vperm.xlu0 %442, %v361
        %v444 = vpop.permute.xlu0 %443
        %447 = vset.pattern.permute.xlu0 0
        %448 = vperm.xlu0 %447, %v362
        %v449 = vpop.permute.xlu0 %448
        %452 = vset.pattern.permute.xlu0 0
        %453 = vperm.xlu0 %452, %v363
        %v454 = vpop.permute.xlu0 %453
        %457 = vset.pattern.permute.xlu0 0
        %458 = vperm.xlu0 %457, %v364
        %v459 = vpop.permute.xlu0 %458
        %462 = vset.pattern.permute.xlu0 0
        %463 = vperm.xlu0 %462, %v365
        %v464 = vpop.permute.xlu0 %463
        %467 = vset.pattern.permute.xlu0 0
        %468 = vperm.xlu0 %467, %v366
        %v469 = vpop.permute.xlu0 %468
        %472 = vset.pattern.permute.xlu0 0
        %473 = vperm.xlu0 %472, %v367
        %v474 = vpop.permute.xlu0 %473
        %477 = vset.pattern.permute.xlu0 0
        %478 = vperm.xlu0 %477, %v368
        %v479 = vpop.permute.xlu0 %478
        %482 = vset.pattern.permute.xlu0 0
        %483 = vperm.xlu0 %482, %v369
        %v484 = vpop.permute.xlu0 %483
        %487 = vset.pattern.permute.xlu0 0
        %488 = vperm.xlu0 %487, %v370
        %v489 = vpop.permute.xlu0 %488
        %492 = vset.pattern.permute.xlu0 0
        %493 = vperm.xlu0 %492, %v371
        %v494 = vpop.permute.xlu0 %493
        %497 = vset.pattern.permute.xlu0 0
        %498 = vperm.xlu0 %497, %v372
        %v499 = vpop.permute.xlu0 %498
        %502 = vset.pattern.permute.xlu0 0
        %503 = vperm.xlu0 %502, %v373
        %v504 = vpop.permute.xlu0 %503
        %507 = vset.pattern.permute.xlu0 0
        %508 = vperm.xlu0 %507, %v374
        %v509 = vpop.permute.xlu0 %508
        %512 = vset.pattern.permute.xlu0 0
        %513 = vperm.xlu0 %512, %v375
        %v514 = vpop.permute.xlu0 %513
        %517 = vset.pattern.permute.xlu0 0
        %518 = vperm.xlu0 %517, %v376
        %v519 = vpop.permute.xlu0 %518
        %522 = vset.pattern.permute.xlu0 0
        %523 = vperm.xlu0 %522, %v377
        %v524 = vpop.permute.xlu0 %523
        %527 = vset.pattern.permute.xlu0 0
        %528 = vperm.xlu0 %527, %v378
        %v529 = vpop.permute.xlu0 %528
        %532 = vset.pattern.permute.xlu0 0
        %533 = vperm.xlu0 %532, %v379
        %v534 = vpop.permute.xlu0 %533
        %537 = vset.pattern.permute.xlu0 0
        %538 = vperm.xlu0 %537, %v380
        %v539 = vpop.permute.xlu0 %538
        %v573 = vunpack.c.l.b16 %v317
        %v574 = vunpack.c.l.b16 %v318
        %v575 = vunpack.c.l.b16 %v319
        %v576 = vunpack.c.l.b16 %v320
        %v577 = vunpack.c.l.b16 %v321
        %v578 = vunpack.c.l.b16 %v322
        %v579 = vunpack.c.l.b16 %v323
        %v580 = vunpack.c.l.b16 %v324
        %v581 = vunpack.c.l.b16 %v325
        %v582 = vunpack.c.l.b16 %v326
        %v583 = vunpack.c.l.b16 %v327
        %v584 = vunpack.c.l.b16 %v328
        %v585 = vunpack.c.l.b16 %v329
        %v586 = vunpack.c.l.b16 %v330
        %v587 = vunpack.c.l.b16 %v331
        %v588 = vunpack.c.l.b16 %v332
        %v589 = vunpack.c.l.b16 %v333
        %v590 = vunpack.c.l.b16 %v334
        %v591 = vunpack.c.l.b16 %v335
        %v592 = vunpack.c.l.b16 %v336
        %v593 = vunpack.c.l.b16 %v337
        %v594 = vunpack.c.l.b16 %v338
        %v595 = vunpack.c.l.b16 %v339
        %v596 = vunpack.c.l.b16 %v340
        %v597 = vunpack.c.l.b16 %v341
        %v598 = vunpack.c.l.b16 %v342
        %v599 = vunpack.c.l.b16 %v343
        %v600 = vunpack.c.l.b16 %v344
        %v601 = vunpack.c.l.b16 %v345
        %v602 = vunpack.c.l.b16 %v346
        %v603 = vunpack.c.l.b16 %v347
        %v604 = vunpack.c.l.b16 %v348
        %v605 = vpack.c.b16 %v574, %v573
        %v606 = vpack.c.b16 %v576, %v575
        %v607 = vpack.c.b16 %v578, %v577
        %v608 = vpack.c.b16 %v580, %v579
        %v609 = vpack.c.b16 %v582, %v581
        %v610 = vpack.c.b16 %v584, %v583
        %v611 = vpack.c.b16 %v586, %v585
        %v612 = vpack.c.b16 %v588, %v587
        %v613 = vpack.c.b16 %v590, %v589
        %v614 = vpack.c.b16 %v592, %v591
        %v615 = vpack.c.b16 %v594, %v593
        %v616 = vpack.c.b16 %v596, %v595
        %v617 = vpack.c.b16 %v598, %v597
        %v618 = vpack.c.b16 %v600, %v599
        %v619 = vpack.c.b16 %v602, %v601
        %v620 = vpack.c.b16 %v604, %v603
        %v629 = vunpack.c.l.b16 %v309
        %v630 = vunpack.c.l.b16 %v310
        %v631 = vunpack.c.l.b16 %v311
        %v632 = vunpack.c.l.b16 %v312
        %v633 = vunpack.c.l.b16 %v313
        %v634 = vunpack.c.l.b16 %v314
        %v635 = vunpack.c.l.b16 %v315
        %v636 = vunpack.c.l.b16 %v316
        %v637 = vpack.c.b16 %v630, %v629
        %v638 = vpack.c.b16 %v632, %v631
        %v639 = vpack.c.b16 %v634, %v633
        %v640 = vpack.c.b16 %v636, %v635
        %vm645 = vcmask 523264
        %v647 = vsel %vm645, %v605, 0
        %v650 = vsel %vm645, %v606, 0
        %v653 = vsel %vm645, %v607, 0
        %v656 = vsel %vm645, %v608, 0
        %v659 = vsel %vm645, %v609, 0
        %v662 = vsel %vm645, %v610, 0
        %v665 = vsel %vm645, %v611, 0
        %v668 = vsel %vm645, %v612, 0
        %v671 = vsel %vm645, %v613, 0
        %v674 = vsel %vm645, %v614, 0
        %v677 = vsel %vm645, %v615, 0
        %v680 = vsel %vm645, %v616, 0
        %v683 = vsel %vm645, %v617, 0
        %v686 = vsel %vm645, %v618, 0
        %v689 = vsel %vm645, %v619, 0
        %v692 = vsel %vm645, %v620, 0
        %694 = vmatprep.subr.bf16.mxu0 0
        %695 = vmatpush1.bf16.msra.mxu0 0
        %696 = vmatprep.subr.bf16.mxu0 0
        %697 = vmatpush1.bf16.msra.mxu0 0
        %698 = vmatprep.subr.bf16.mxu0 0
        %699 = vmatpush1.bf16.msra.mxu0 0
        %700 = vmatprep.subr.bf16.mxu0 0
        %701 = vmatpush1.bf16.msra.mxu0 0
        %702 = vmatprep.subr.bf16.mxu0 0
        %703 = vmatpush1.bf16.msra.mxu0 %v640
        %704 = vmatprep.subr.bf16.mxu0 0
        %705 = vmatpush1.bf16.msra.mxu0 %v639
        %706 = vmatprep.subr.bf16.mxu0 0
        %707 = vmatpush1.bf16.msra.mxu0 %v638
        %708 = vmatprep.subr.bf16.mxu0 0
        %709 = vmatpush1.bf16.msra.mxu0 %v637
        %710 = vmatprep.subr.bf16.mxu0 0
        %711 = vmatpush2.bf16.msra.mxu0 0
        %712 = vmatprep.subr.bf16.mxu0 0
        %713 = vmatpush2.bf16.msra.mxu0 0
        %714 = vmatprep.subr.bf16.mxu0 0
        %715 = vmatpush2.bf16.msra.mxu0 0
        %716 = vmatprep.subr.bf16.mxu0 0
        %717 = vmatpush2.bf16.msra.mxu0 0
        %718 = vmatprep.subr.bf16.mxu0 0
        %719 = vmatpush2.bf16.msra.mxu0 0
        %720 = vmatprep.subr.bf16.mxu0 0
        %721 = vmatpush2.bf16.msra.mxu0 0
        %722 = vmatprep.subr.bf16.mxu0 0
        %723 = vmatpush2.bf16.msra.mxu0 0
        %724 = vmatprep.subr.bf16.mxu0 0
        %725 = vmatpush2.bf16.msra.mxu0 0
        %726 = vmatprep.mubr.bf16.mxu0 0
        %727 = vmatmul.mubr.bf16.gmra.mxu0 %v647
        %v728 = vpop.f32.mrf.mxu0
        %v729 = vadd.f32 %v384, %v728
        %v730 = vpop.f32.mrf.mxu0
        %v731 = vpop.f32.mrf.mxu0
        %v732 = vadd.f32 %v389, %v731
        %v733 = vpop.f32.mrf.mxu0
        %734 = vmatprep.mubr.bf16.mxu0 0
        %735 = vmatmul.mubr.bf16.gmra.mxu0 %v650
        %v736 = vpop.f32.mrf.mxu0
        %v737 = vadd.f32 %v394, %v736
        %v738 = vpop.f32.mrf.mxu0
        %v739 = vpop.f32.mrf.mxu0
        %v740 = vadd.f32 %v399, %v739
        %v741 = vpop.f32.mrf.mxu0
        %742 = vmatprep.mubr.bf16.mxu0 0
        %743 = vmatmul.mubr.bf16.gmra.mxu0 %v653
        %v744 = vpop.f32.mrf.mxu0
        %v745 = vadd.f32 %v404, %v744
        %v746 = vpop.f32.mrf.mxu0
        %v747 = vpop.f32.mrf.mxu0
        %v748 = vadd.f32 %v409, %v747
        %v749 = vpop.f32.mrf.mxu0
        %750 = vmatprep.mubr.bf16.mxu0 0
        %751 = vmatmul.mubr.bf16.gmra.mxu0 %v656
        %v752 = vpop.f32.mrf.mxu0
        %v753 = vadd.f32 %v414, %v752
        %v754 = vpop.f32.mrf.mxu0
        %v755 = vpop.f32.mrf.mxu0
        %v756 = vadd.f32 %v419, %v755
        %v757 = vpop.f32.mrf.mxu0
        %758 = vmatprep.mubr.bf16.mxu0 0
        %759 = vmatmul.mubr.bf16.gmra.mxu0 %v659
        %v760 = vpop.f32.mrf.mxu0
        %v761 = vadd.f32 %v424, %v760
        %v762 = vpop.f32.mrf.mxu0
        %v763 = vpop.f32.mrf.mxu0
        %v764 = vadd.f32 %v429, %v763
        %v765 = vpop.f32.mrf.mxu0
        %766 = vmatprep.mubr.bf16.mxu0 0
        %767 = vmatmul.mubr.bf16.gmra.mxu0 %v662
        %v768 = vpop.f32.mrf.mxu0
        %v769 = vadd.f32 %v434, %v768
        %v770 = vpop.f32.mrf.mxu0
        %v771 = vpop.f32.mrf.mxu0
        %v772 = vadd.f32 %v439, %v771
        %v773 = vpop.f32.mrf.mxu0
        %774 = vmatprep.mubr.bf16.mxu0 0
        %775 = vmatmul.mubr.bf16.gmra.mxu0 %v665
        %v776 = vpop.f32.mrf.mxu0
        %v777 = vadd.f32 %v444, %v776
        %v778 = vpop.f32.mrf.mxu0
        %v779 = vpop.f32.mrf.mxu0
        %v780 = vadd.f32 %v449, %v779
        %v781 = vpop.f32.mrf.mxu0
        %782 = vmatprep.mubr.bf16.mxu0 0
        %783 = vmatmul.mubr.bf16.gmra.mxu0 %v668
        %v784 = vpop.f32.mrf.mxu0
        %v785 = vadd.f32 %v454, %v784
        %v786 = vpop.f32.mrf.mxu0
        %v787 = vpop.f32.mrf.mxu0
        %v788 = vadd.f32 %v459, %v787
        %v789 = vpop.f32.mrf.mxu0
        %790 = vmatprep.mubr.bf16.mxu0 0
        %791 = vmatmul.mubr.bf16.gmra.mxu0 %v671
        %v792 = vpop.f32.mrf.mxu0
        %v793 = vadd.f32 %v464, %v792
        %v794 = vpop.f32.mrf.mxu0
        %v795 = vpop.f32.mrf.mxu0
        %v796 = vadd.f32 %v469, %v795
        %v797 = vpop.f32.mrf.mxu0
        %798 = vmatprep.mubr.bf16.mxu0 0
        %799 = vmatmul.mubr.bf16.gmra.mxu0 %v674
        %v800 = vpop.f32.mrf.mxu0
        %v801 = vadd.f32 %v474, %v800
        %v802 = vpop.f32.mrf.mxu0
        %v803 = vpop.f32.mrf.mxu0
        %v804 = vadd.f32 %v479, %v803
        %v805 = vpop.f32.mrf.mxu0
        %806 = vmatprep.mubr.bf16.mxu0 0
        %807 = vmatmul.mubr.bf16.gmra.mxu0 %v677
        %v808 = vpop.f32.mrf.mxu0
        %v809 = vadd.f32 %v484, %v808
        %v810 = vpop.f32.mrf.mxu0
        %v811 = vpop.f32.mrf.mxu0
        %v812 = vadd.f32 %v489, %v811
        %v813 = vpop.f32.mrf.mxu0
        %814 = vmatprep.mubr.bf16.mxu0 0
        %815 = vmatmul.mubr.bf16.gmra.mxu0 %v680
        %v816 = vpop.f32.mrf.mxu0
        %v817 = vadd.f32 %v494, %v816
        %v818 = vpop.f32.mrf.mxu0
        %v819 = vpop.f32.mrf.mxu0
        %v820 = vadd.f32 %v499, %v819
        %v821 = vpop.f32.mrf.mxu0
        %822 = vmatprep.mubr.bf16.mxu0 0
        %823 = vmatmul.mubr.bf16.gmra.mxu0 %v683
        %v824 = vpop.f32.mrf.mxu0
        %v825 = vadd.f32 %v504, %v824
        %v826 = vpop.f32.mrf.mxu0
        %v827 = vpop.f32.mrf.mxu0
        %v828 = vadd.f32 %v509, %v827
        %v829 = vpop.f32.mrf.mxu0
        %830 = vmatprep.mubr.bf16.mxu0 0
        %831 = vmatmul.mubr.bf16.gmra.mxu0 %v686
        %v832 = vpop.f32.mrf.mxu0
        %v833 = vadd.f32 %v514, %v832
        %v834 = vpop.f32.mrf.mxu0
        %v835 = vpop.f32.mrf.mxu0
        %v836 = vadd.f32 %v519, %v835
        %v837 = vpop.f32.mrf.mxu0
        %838 = vmatprep.mubr.bf16.mxu0 0
        %839 = vmatmul.mubr.bf16.gmra.mxu0 %v689
        %v840 = vpop.f32.mrf.mxu0
        %v841 = vadd.f32 %v524, %v840
        %v842 = vpop.f32.mrf.mxu0
        %v843 = vpop.f32.mrf.mxu0
        %v844 = vadd.f32 %v529, %v843
        %v845 = vpop.f32.mrf.mxu0
        %846 = vmatprep.mubr.bf16.mxu0 0
        %847 = vmatmul.mubr.bf16.gmra.mxu0 %v692
        %v848 = vpop.f32.mrf.mxu0
        %v849 = vadd.f32 %v534, %v848
        %v850 = vpop.f32.mrf.mxu0
        %v851 = vpop.f32.mrf.mxu0
        %v852 = vadd.f32 %v539, %v851
        %v853 = vpop.f32.mrf.mxu0
        %854 = vdwg.mxu0
        %v855 = vmul.f32 %v729, 0.5
        %v856 = vmul.f32 %v732, 0.5
        %v857 = vmul.f32 %v737, 0.5
        %v858 = vmul.f32 %v740, 0.5
        %v859 = vmul.f32 %v745, 0.5
        %v860 = vmul.f32 %v748, 0.5
        %v861 = vmul.f32 %v753, 0.5
        %v862 = vmul.f32 %v756, 0.5
        %v863 = vmul.f32 %v761, 0.5
        %v864 = vmul.f32 %v764, 0.5
        %v865 = vmul.f32 %v769, 0.5
        %v866 = vmul.f32 %v772, 0.5
        %v867 = vmul.f32 %v777, 0.5
        %v868 = vmul.f32 %v780, 0.5
        %v869 = vmul.f32 %v785, 0.5
        %v870 = vmul.f32 %v788, 0.5
        %v871 = vmul.f32 %v793, 0.5
        %v872 = vmul.f32 %v796, 0.5
        %v873 = vmul.f32 %v801, 0.5
        %v874 = vmul.f32 %v804, 0.5
        %v875 = vmul.f32 %v809, 0.5
        %v876 = vmul.f32 %v812, 0.5
        %v877 = vmul.f32 %v817, 0.5
        %v878 = vmul.f32 %v820, 0.5
        %v879 = vmul.f32 %v825, 0.5
        %v880 = vmul.f32 %v828, 0.5
        %v881 = vmul.f32 %v833, 0.5
        %v882 = vmul.f32 %v836, 0.5
        %v883 = vmul.f32 %v841, 0.5
        %v884 = vmul.f32 %v844, 0.5
        %v885 = vmul.f32 %v849, 0.5
        %v886 = vmul.f32 %v852, 0.5
        %v887 = vmul.f32 %v729, %v729
        %v888 = vmul.f32 %v732, %v732
        %v889 = vmul.f32 %v737, %v737
        %v890 = vmul.f32 %v740, %v740
        %v891 = vmul.f32 %v745, %v745
        %v892 = vmul.f32 %v748, %v748
        %v893 = vmul.f32 %v753, %v753
        %v894 = vmul.f32 %v756, %v756
        %v895 = vmul.f32 %v761, %v761
        %v896 = vmul.f32 %v764, %v764
        %v897 = vmul.f32 %v769, %v769
        %v898 = vmul.f32 %v772, %v772
        %v899 = vmul.f32 %v777, %v777
        %v900 = vmul.f32 %v780, %v780
        %v901 = vmul.f32 %v785, %v785
        %v902 = vmul.f32 %v788, %v788
        %v903 = vmul.f32 %v793, %v793
        %v904 = vmul.f32 %v796, %v796
        %v905 = vmul.f32 %v801, %v801
        %v906 = vmul.f32 %v804, %v804
        %v907 = vmul.f32 %v809, %v809
        %v908 = vmul.f32 %v812, %v812
        %v909 = vmul.f32 %v817, %v817
        %v910 = vmul.f32 %v820, %v820
        %v911 = vmul.f32 %v825, %v825
        %v912 = vmul.f32 %v828, %v828
        %v913 = vmul.f32 %v833, %v833
        %v914 = vmul.f32 %v836, %v836
        %v915 = vmul.f32 %v841, %v841
        %v916 = vmul.f32 %v844, %v844
        %v917 = vmul.f32 %v849, %v849
        %v918 = vmul.f32 %v852, %v852
        %v919 = vmul.f32 %v887, %v729
        %v920 = vmul.f32 %v888, %v732
        %v921 = vmul.f32 %v889, %v737
        %v922 = vmul.f32 %v890, %v740
        %v923 = vmul.f32 %v891, %v745
        %v924 = vmul.f32 %v892, %v748
        %v925 = vmul.f32 %v893, %v753
        %v926 = vmul.f32 %v894, %v756
        %v927 = vmul.f32 %v895, %v761
        %v928 = vmul.f32 %v896, %v764
        %v929 = vmul.f32 %v897, %v769
        %v930 = vmul.f32 %v898, %v772
        %v931 = vmul.f32 %v899, %v777
        %v932 = vmul.f32 %v900, %v780
        %v933 = vmul.f32 %v901, %v785
        %v934 = vmul.f32 %v902, %v788
        %v935 = vmul.f32 %v903, %v793
        %v936 = vmul.f32 %v904, %v796
        %v937 = vmul.f32 %v905, %v801
        %v938 = vmul.f32 %v906, %v804
        %v939 = vmul.f32 %v907, %v809
        %v940 = vmul.f32 %v908, %v812
        %v941 = vmul.f32 %v909, %v817
        %v942 = vmul.f32 %v910, %v820
        %v943 = vmul.f32 %v911, %v825
        %v944 = vmul.f32 %v912, %v828
        %v945 = vmul.f32 %v913, %v833
        %v946 = vmul.f32 %v914, %v836
        %v947 = vmul.f32 %v915, %v841
        %v948 = vmul.f32 %v916, %v844
        %v949 = vmul.f32 %v917, %v849
        %v950 = vmul.f32 %v918, %v852
        %v951 = vmul.f32 %v919, 0.044715
        %v952 = vmul.f32 %v920, 0.044715
        %v953 = vmul.f32 %v921, 0.044715
        %v954 = vmul.f32 %v922, 0.044715
        %v955 = vmul.f32 %v923, 0.044715
        %v956 = vmul.f32 %v924, 0.044715
        %v957 = vmul.f32 %v925, 0.044715
        %v958 = vmul.f32 %v926, 0.044715
        %v959 = vmul.f32 %v927, 0.044715
        %v960 = vmul.f32 %v928, 0.044715
        %v961 = vmul.f32 %v929, 0.044715
        %v962 = vmul.f32 %v930, 0.044715
        %v963 = vmul.f32 %v931, 0.044715
        %v964 = vmul.f32 %v932, 0.044715
        %v965 = vmul.f32 %v933, 0.044715
        %v966 = vmul.f32 %v934, 0.044715
        %v967 = vmul.f32 %v935, 0.044715
        %v968 = vmul.f32 %v936, 0.044715
        %v969 = vmul.f32 %v937, 0.044715
        %v970 = vmul.f32 %v938, 0.044715
        %v971 = vmul.f32 %v939, 0.044715
        %v972 = vmul.f32 %v940, 0.044715
        %v973 = vmul.f32 %v941, 0.044715
        %v974 = vmul.f32 %v942, 0.044715
        %v975 = vmul.f32 %v943, 0.044715
        %v976 = vmul.f32 %v944, 0.044715
        %v977 = vmul.f32 %v945, 0.044715
        %v978 = vmul.f32 %v946, 0.044715
        %v979 = vmul.f32 %v947, 0.044715
        %v980 = vmul.f32 %v948, 0.044715
        %v981 = vmul.f32 %v949, 0.044715
        %v982 = vmul.f32 %v950, 0.044715
        %v983 = vadd.f32 %v729, %v951
        %v984 = vadd.f32 %v732, %v952
        %v985 = vadd.f32 %v737, %v953
        %v986 = vadd.f32 %v740, %v954
        %v987 = vadd.f32 %v745, %v955
        %v988 = vadd.f32 %v748, %v956
        %v989 = vadd.f32 %v753, %v957
        %v990 = vadd.f32 %v756, %v958
        %v991 = vadd.f32 %v761, %v959
        %v992 = vadd.f32 %v764, %v960
        %v993 = vadd.f32 %v769, %v961
        %v994 = vadd.f32 %v772, %v962
        %v995 = vadd.f32 %v777, %v963
        %v996 = vadd.f32 %v780, %v964
        %v997 = vadd.f32 %v785, %v965
        %v998 = vadd.f32 %v788, %v966
        %v999 = vadd.f32 %v793, %v967
        %v1000 = vadd.f32 %v796, %v968
        %v1001 = vadd.f32 %v801, %v969
        %v1002 = vadd.f32 %v804, %v970
        %v1003 = vadd.f32 %v809, %v971
        %v1004 = vadd.f32 %v812, %v972
        %v1005 = vadd.f32 %v817, %v973
        %v1006 = vadd.f32 %v820, %v974
        %v1007 = vadd.f32 %v825, %v975
        %v1008 = vadd.f32 %v828, %v976
        %v1009 = vadd.f32 %v833, %v977
        %v1010 = vadd.f32 %v836, %v978
        %v1011 = vadd.f32 %v841, %v979
        %v1012 = vadd.f32 %v844, %v980
        %v1013 = vadd.f32 %v849, %v981
        %v1014 = vadd.f32 %v852, %v982
        %v1015 = vmul.f32 %v983, 0.7978846
        %v1016 = vmul.f32 %v984, 0.7978846
        %v1017 = vmul.f32 %v985, 0.7978846
        %v1018 = vmul.f32 %v986, 0.7978846
        %v1019 = vmul.f32 %v987, 0.7978846
        %v1020 = vmul.f32 %v988, 0.7978846
        %v1021 = vmul.f32 %v989, 0.7978846
        %v1022 = vmul.f32 %v990, 0.7978846
        %v1023 = vmul.f32 %v991, 0.7978846
        %v1024 = vmul.f32 %v992, 0.7978846
        %v1025 = vmul.f32 %v993, 0.7978846
        %v1026 = vmul.f32 %v994, 0.7978846
        %v1027 = vmul.f32 %v995, 0.7978846
        %v1028 = vmul.f32 %v996, 0.7978846
        %v1029 = vmul.f32 %v997, 0.7978846
        %v1030 = vmul.f32 %v998, 0.7978846
        %v1031 = vmul.f32 %v999, 0.7978846
        %v1032 = vmul.f32 %v1000, 0.7978846
        %v1033 = vmul.f32 %v1001, 0.7978846
        %v1034 = vmul.f32 %v1002, 0.7978846
        %v1035 = vmul.f32 %v1003, 0.7978846
        %v1036 = vmul.f32 %v1004, 0.7978846
        %v1037 = vmul.f32 %v1005, 0.7978846
        %v1038 = vmul.f32 %v1006, 0.7978846
        %v1039 = vmul.f32 %v1007, 0.7978846
        %v1040 = vmul.f32 %v1008, 0.7978846
        %v1041 = vmul.f32 %v1009, 0.7978846
        %v1042 = vmul.f32 %v1010, 0.7978846
        %v1043 = vmul.f32 %v1011, 0.7978846
        %v1044 = vmul.f32 %v1012, 0.7978846
        %v1045 = vmul.f32 %v1013, 0.7978846
        %v1046 = vmul.f32 %v1014, 0.7978846
        %v1047 = vtanh.pop %v1015
        %v1048 = vtanh.pop %v1016
        %v1049 = vtanh.pop %v1017
        %v1050 = vtanh.pop %v1018
        %v1051 = vtanh.pop %v1019
        %v1052 = vtanh.pop %v1020
        %v1053 = vtanh.pop %v1021
        %v1054 = vtanh.pop %v1022
        %v1055 = vtanh.pop %v1023
        %v1056 = vtanh.pop %v1024
        %v1057 = vtanh.pop %v1025
        %v1058 = vtanh.pop %v1026
        %v1059 = vtanh.pop %v1027
        %v1060 = vtanh.pop %v1028
        %v1061 = vtanh.pop %v1029
        %v1062 = vtanh.pop %v1030
        %v1063 = vtanh.pop %v1031
        %v1064 = vtanh.pop %v1032
        %v1065 = vtanh.pop %v1033
        %v1066 = vtanh.pop %v1034
        %v1067 = vtanh.pop %v1035
        %v1068 = vtanh.pop %v1036
        %v1069 = vtanh.pop %v1037
        %v1070 = vtanh.pop %v1038
        %v1071 = vtanh.pop %v1039
        %v1072 = vtanh.pop %v1040
        %v1073 = vtanh.pop %v1041
        %v1074 = vtanh.pop %v1042
        %v1075 = vtanh.pop %v1043
        %v1076 = vtanh.pop %v1044
        %v1077 = vtanh.pop %v1045
        %v1078 = vtanh.pop %v1046
        %v1079 = vadd.f32 %v1047, 1.0
        %v1080 = vadd.f32 %v1048, 1.0
        %v1081 = vadd.f32 %v1049, 1.0
        %v1082 = vadd.f32 %v1050, 1.0
        %v1083 = vadd.f32 %v1051, 1.0
        %v1084 = vadd.f32 %v1052, 1.0
        %v1085 = vadd.f32 %v1053, 1.0
        %v1086 = vadd.f32 %v1054, 1.0
        %v1087 = vadd.f32 %v1055, 1.0
        %v1088 = vadd.f32 %v1056, 1.0
        %v1089 = vadd.f32 %v1057, 1.0
        %v1090 = vadd.f32 %v1058, 1.0
        %v1091 = vadd.f32 %v1059, 1.0
        %v1092 = vadd.f32 %v1060, 1.0
        %v1093 = vadd.f32 %v1061, 1.0
        %v1094 = vadd.f32 %v1062, 1.0
        %v1095 = vadd.f32 %v1063, 1.0
        %v1096 = vadd.f32 %v1064, 1.0
        %v1097 = vadd.f32 %v1065, 1.0
        %v1098 = vadd.f32 %v1066, 1.0
        %v1099 = vadd.f32 %v1067, 1.0
        %v1100 = vadd.f32 %v1068, 1.0
        %v1101 = vadd.f32 %v1069, 1.0
        %v1102 = vadd.f32 %v1070, 1.0
        %v1103 = vadd.f32 %v1071, 1.0
        %v1104 = vadd.f32 %v1072, 1.0
        %v1105 = vadd.f32 %v1073, 1.0
        %v1106 = vadd.f32 %v1074, 1.0
        %v1107 = vadd.f32 %v1075, 1.0
        %v1108 = vadd.f32 %v1076, 1.0
        %v1109 = vadd.f32 %v1077, 1.0
        %v1110 = vadd.f32 %v1078, 1.0
        %v1111 = vmul.f32 %v855, %v1079
        %v1112 = vmul.f32 %v856, %v1080
        %v1113 = vmul.f32 %v857, %v1081
        %v1114 = vmul.f32 %v858, %v1082
        %v1115 = vmul.f32 %v859, %v1083
        %v1116 = vmul.f32 %v860, %v1084
        %v1117 = vmul.f32 %v861, %v1085
        %v1118 = vmul.f32 %v862, %v1086
        %v1119 = vmul.f32 %v863, %v1087
        %v1120 = vmul.f32 %v864, %v1088
        %v1121 = vmul.f32 %v865, %v1089
        %v1122 = vmul.f32 %v866, %v1090
        %v1123 = vmul.f32 %v867, %v1091
        %v1124 = vmul.f32 %v868, %v1092
        %v1125 = vmul.f32 %v869, %v1093
        %v1126 = vmul.f32 %v870, %v1094
        %v1127 = vmul.f32 %v871, %v1095
        %v1128 = vmul.f32 %v872, %v1096
        %v1129 = vmul.f32 %v873, %v1097
        %v1130 = vmul.f32 %v874, %v1098
        %v1131 = vmul.f32 %v875, %v1099
        %v1132 = vmul.f32 %v876, %v1100
        %v1133 = vmul.f32 %v877, %v1101
        %v1134 = vmul.f32 %v878, %v1102
        %v1135 = vmul.f32 %v879, %v1103
        %v1136 = vmul.f32 %v880, %v1104
        %v1137 = vmul.f32 %v881, %v1105
        %v1138 = vmul.f32 %v882, %v1106
        %v1139 = vmul.f32 %v883, %v1107
        %v1140 = vmul.f32 %v884, %v1108
        %v1141 = vmul.f32 %v885, %v1109
        %v1142 = vmul.f32 %v886, %v1110
        %v1143 = vld [vmem:[%s3] sm:$0xff]
        %v1144 = vld [vmem:[%s3 + $0x8] sm:$0xff]
        %v1145 = vld [vmem:[%s3 + $0x10] sm:$0xff]
        %v1146 = vld [vmem:[%s3 + $0x18] sm:$0xff]
        %v1147 = vld [vmem:[%s3 + $0x20] sm:$0xff]
        %v1148 = vld [vmem:[%s3 + $0x28] sm:$0xff]
        %v1149 = vld [vmem:[%s3 + $0x30] sm:$0xff]
        %v1150 = vld [vmem:[%s3 + $0x38] sm:$0xff]
        %v1151 = vpack.c.bf16 %v1112, %v1111
        %v1152 = vpack.c.bf16 %v1114, %v1113
        %v1153 = vpack.c.bf16 %v1116, %v1115
        %v1154 = vpack.c.bf16 %v1118, %v1117
        %v1155 = vpack.c.bf16 %v1120, %v1119
        %v1156 = vpack.c.bf16 %v1122, %v1121
        %v1157 = vpack.c.bf16 %v1124, %v1123
        %v1158 = vpack.c.bf16 %v1126, %v1125
        %v1159 = vpack.c.bf16 %v1128, %v1127
        %v1160 = vpack.c.bf16 %v1130, %v1129
        %v1161 = vpack.c.bf16 %v1132, %v1131
        %v1162 = vpack.c.bf16 %v1134, %v1133
        %v1163 = vpack.c.bf16 %v1136, %v1135
        %v1164 = vpack.c.bf16 %v1138, %v1137
        %v1165 = vpack.c.bf16 %v1140, %v1139
        %v1166 = vpack.c.bf16 %v1142, %v1141
        %v1167 = vld [vmem:[%s4] sm:$0xff]
        %v1168 = vld [vmem:[%s4 + $0x8] sm:$0xff]
        %v1169 = vld [vmem:[%s4 + $0x10] sm:$0xff]
        %v1170 = vld [vmem:[%s4 + $0x18] sm:$0xff]
        %v1171 = vld [vmem:[%s4 + $0x20] sm:$0xff]
        %v1172 = vld [vmem:[%s4 + $0x28] sm:$0xff]
        %v1173 = vld [vmem:[%s4 + $0x30] sm:$0xff]
        %v1174 = vld [vmem:[%s4 + $0x38] sm:$0xff]
        %1176 = vset.pattern.permute.xlu0 0
        %1177 = vperm.xlu0 %1176, %v1167
        %v1178 = vpop.permute.xlu0 %1177
        %1181 = vset.pattern.permute.xlu0 0
        %1182 = vperm.xlu0 %1181, %v1168
        %v1183 = vpop.permute.xlu0 %1182
        %1186 = vset.pattern.permute.xlu0 0
        %1187 = vperm.xlu0 %1186, %v1169
        %v1188 = vpop.permute.xlu0 %1187
        %1191 = vset.pattern.permute.xlu0 0
        %1192 = vperm.xlu0 %1191, %v1170
        %v1193 = vpop.permute.xlu0 %1192
        %1196 = vset.pattern.permute.xlu0 0
        %1197 = vperm.xlu0 %1196, %v1171
        %v1198 = vpop.permute.xlu0 %1197
        %1201 = vset.pattern.permute.xlu0 0
        %1202 = vperm.xlu0 %1201, %v1172
        %v1203 = vpop.permute.xlu0 %1202
        %1206 = vset.pattern.permute.xlu0 0
        %1207 = vperm.xlu0 %1206, %v1173
        %v1208 = vpop.permute.xlu0 %1207
        %1211 = vset.pattern.permute.xlu0 0
        %1212 = vperm.xlu0 %1211, %v1174
        %v1213 = vpop.permute.xlu0 %1212
        %v1223 = vunpack.c.l.b16 %v1143
        %v1224 = vunpack.c.h.b16 %v1143
        %v1225 = vunpack.c.l.b16 %v1144
        %v1226 = vunpack.c.h.b16 %v1144
        %v1227 = vunpack.c.l.b16 %v1145
        %v1228 = vunpack.c.h.b16 %v1145
        %v1229 = vunpack.c.l.b16 %v1146
        %v1230 = vunpack.c.h.b16 %v1146
        %v1231 = vunpack.c.l.b16 %v1147
        %v1232 = vunpack.c.h.b16 %v1147
        %v1233 = vunpack.c.l.b16 %v1148
        %v1234 = vunpack.c.h.b16 %v1148
        %v1235 = vunpack.c.l.b16 %v1149
        %v1236 = vunpack.c.h.b16 %v1149
        %v1237 = vunpack.c.l.b16 %v1150
        %v1238 = vunpack.c.h.b16 %v1150
        %v1239 = vpack.c.b16 %v1225, %v1223
        %v1240 = vpack.c.b16 %v1226, %v1224
        %v1241 = vpack.c.b16 %v1229, %v1227
        %v1242 = vpack.c.b16 %v1230, %v1228
        %v1243 = vpack.c.b16 %v1233, %v1231
        %v1244 = vpack.c.b16 %v1234, %v1232
        %v1245 = vpack.c.b16 %v1237, %v1235
        %v1246 = vpack.c.b16 %v1238, %v1236
        %1255 = vmatprep.subr.bf16.mxu0 0
        %1256 = vmatpush1.bf16.msra.mxu0 %v1158
        %1257 = vmatprep.subr.bf16.mxu0 0
        %1258 = vmatpush1.bf16.msra.mxu0 %v1157
        %1259 = vmatprep.subr.bf16.mxu0 0
        %1260 = vmatpush1.bf16.msra.mxu0 %v1156
        %1261 = vmatprep.subr.bf16.mxu0 0
        %1262 = vmatpush1.bf16.msra.mxu0 %v1155
        %1263 = vmatprep.subr.bf16.mxu0 0
        %1264 = vmatpush1.bf16.msra.mxu0 %v1154
        %1265 = vmatprep.subr.bf16.mxu0 0
        %1266 = vmatpush1.bf16.msra.mxu0 %v1153
        %1267 = vmatprep.subr.bf16.mxu0 0
        %1268 = vmatpush1.bf16.msra.mxu0 %v1152
        %1269 = vmatprep.subr.bf16.mxu0 0
        %1270 = vmatpush1.bf16.msra.mxu0 %v1151
        %1271 = vmatprep.subr.bf16.mxu0 0
        %1272 = vmatpush2.bf16.msra.mxu0 %v1166
        %1273 = vmatprep.subr.bf16.mxu0 0
        %1274 = vmatpush2.bf16.msra.mxu0 %v1165
        %1275 = vmatprep.subr.bf16.mxu0 0
        %1276 = vmatpush2.bf16.msra.mxu0 %v1164
        %1277 = vmatprep.subr.bf16.mxu0 0
        %1278 = vmatpush2.bf16.msra.mxu0 %v1163
        %1279 = vmatprep.subr.bf16.mxu0 0
        %1280 = vmatpush2.bf16.msra.mxu0 %v1162
        %1281 = vmatprep.subr.bf16.mxu0 0
        %1282 = vmatpush2.bf16.msra.mxu0 %v1161
        %1283 = vmatprep.subr.bf16.mxu0 0
        %1284 = vmatpush2.bf16.msra.mxu0 %v1160
        %1285 = vmatprep.subr.bf16.mxu0 0
        %1286 = vmatpush2.bf16.msra.mxu0 %v1159
        %1287 = vmatprep.mubr.bf16.mxu0 %v1240
        %1288 = vmatmul.mubr.bf16.gmra.mxu0 %v1239
        %v1289 = vpop.f32.mrf.mxu0
        %v1290 = vadd.f32 %v1178, %v1289
        %v1291 = vpop.f32.mrf.mxu0
        %v1292 = vpop.f32.mrf.mxu0
        %v1293 = vadd.f32 %v1183, %v1292
        %v1294 = vpop.f32.mrf.mxu0
        %1295 = vmatprep.mubr.bf16.mxu0 %v1242
        %1296 = vmatmul.mubr.bf16.gmra.mxu0 %v1241
        %v1297 = vpop.f32.mrf.mxu0
        %v1298 = vadd.f32 %v1188, %v1297
        %v1299 = vpop.f32.mrf.mxu0
        %v1300 = vpop.f32.mrf.mxu0
        %v1301 = vadd.f32 %v1193, %v1300
        %v1302 = vpop.f32.mrf.mxu0
        %1303 = vmatprep.mubr.bf16.mxu0 %v1244
        %1304 = vmatmul.mubr.bf16.gmra.mxu0 %v1243
        %v1305 = vpop.f32.mrf.mxu0
        %v1306 = vadd.f32 %v1198, %v1305
        %v1307 = vpop.f32.mrf.mxu0
        %v1308 = vpop.f32.mrf.mxu0
        %v1309 = vadd.f32 %v1203, %v1308
        %v1310 = vpop.f32.mrf.mxu0
        %1311 = vmatprep.mubr.bf16.mxu0 %v1246
        %1312 = vmatmul.mubr.bf16.gmra.mxu0 %v1245
        %v1313 = vpop.f32.mrf.mxu0
        %v1314 = vadd.f32 %v1208, %v1313
        %v1315 = vpop.f32.mrf.mxu0
        %v1316 = vpop.f32.mrf.mxu0
        %v1317 = vadd.f32 %v1213, %v1316
        %v1318 = vpop.f32.mrf.mxu0
        %1319 = vdwg.mxu0
        %v1320 = vpack.c.bf16 %v1293, %v1290
        %v1321 = vpack.c.bf16 %v1301, %v1298
        %v1322 = vpack.c.bf16 %v1309, %v1306
        %v1323 = vpack.c.bf16 %v1317, %v1314
        %v1328 = vunpack.c.l.b16 %v1320
        %v1329 = vunpack.c.h.b16 %v1320
        %v1330 = vunpack.c.l.b16 %v1321
        %v1331 = vunpack.c.h.b16 %v1321
        %v1332 = vunpack.c.l.b16 %v1322
        %v1333 = vunpack.c.h.b16 %v1322
        %v1334 = vunpack.c.l.b16 %v1323
        %v1335 = vunpack.c.h.b16 %v1323
        %v1336 = vpack.c.b16 %v1328, %v1328
        %v1337 = vpack.c.b16 %v1329, %v1329
        %v1338 = vpack.c.b16 %v1330, %v1330
        %v1339 = vpack.c.b16 %v1331, %v1331
        %v1340 = vpack.c.b16 %v1332, %v1332
        %v1341 = vpack.c.b16 %v1333, %v1333
        %v1342 = vpack.c.b16 %v1334, %v1334
        %v1343 = vpack.c.b16 %v1335, %v1335
        %1352 = vst [vmem:[%s307] sm:$0xf] %v1336
        %1353 = vst [vmem:[%s307 + $0x4] sm:$0xf] %v1337
        %1354 = vst [vmem:[%s307 + $0x8] sm:$0xf] %v1338
        %1355 = vst [vmem:[%s307 + $0xc] sm:$0xf] %v1339
        %1356 = vst [vmem:[%s307 + $0x10] sm:$0xf] %v1340
        %1357 = vst [vmem:[%s307 + $0x14] sm:$0xf] %v1341
        %1358 = vst [vmem:[%s307 + $0x18] sm:$0xf] %v1342
        %1359 = vst [vmem:[%s307 + $0x1c] sm:$0xf] %v1343
        %s1360 = sand.u32 %s150, 1
        %s1361 = sand.u32 %s150, 1
        %s1362 = smul.addr %s1361, 32
        %s1363 = scalar_lea.vmem [#allocation3], %s1362
        // Predicated region
        $region82: #{feed_forward.1} parent=76 // pred_check
          %p1364 = pneg %p160
        $region83: #{feed_forward.1} parent=76 // pred_check_branch
          %1366 = sbr.rel (%p1364) target = $region85
        $region84: #{feed_forward.1} parent=76 // pred_region
          %s1367 = smul.addr %s20, 16
          %s1368 = sadd.s32 %s21, %s1367
          %s1369 = smul.addr %s1368, 4
          %s1370 = scalar_lea.vmem %s5, %s1369
          // Predicated region
          $region86: #{feed_forward.1} parent=84 // pred_check
            _
          $region87: #{feed_forward.1} parent=84 // pred_check_branch
            %1372 = sbr.rel (0) target = $region89
          $region88: #{feed_forward.1} parent=84 // pred_region
            // Predicated region
            $region90: #{feed_forward.1} parent=88 // pred_check
              _
            $region91: #{feed_forward.1} parent=88 // pred_check_branch
              %1374 = sbr.rel target = $region93
            $region92: #{feed_forward.1} parent=88 // pred_region
              // Predicated region
              $region105: #{feed_forward.1} parent=92 // pred_check
                _
              $region106: #{feed_forward.1} parent=92 // pred_check_branch
                %1404 = sbr.rel (0) target = $region108
              $region107: #{feed_forward.1} parent=92 // pred_region
                loop: start=0, step=1, limit=1
                $region109: #{feed_forward.1} parent=107 // loop_pre_header
                  _
                $region110: #{feed_forward.1} parent=107 // loop_header
                  %s1406 = sphi 0, %s1410
                  %p1407 = scmp.ge.s32.totalorder %s1406, 1
                  %s1411 = sphi %s1363, %s1363
                  %s1412 = sphi %s1370, %s1370
                $region111: #{feed_forward.1} parent=107 // loop_header_branch
                  %1409 = sbr.rel (%p1407) target = $region115
                $region112: #{feed_forward.1} parent=107 // loop_body
                  _
                $region113: #{feed_forward.1} parent=107 // loop_footer
                  %s1410 = sadd.s32 1, %s1406
                $region114: #{feed_forward.1} parent=107 // loop_footer_branch
                  %1405 = sbr.rel target = $region110
                $region115: #{feed_forward.1} parent=107 // loop_exit
                  _
                %s1414 = ssub.s32 16, 1
                loop: start=0, step=1, limit=1
                $region116: #{feed_forward.1} parent=107 // loop_pre_header
                  _
                $region117: #{feed_forward.1} parent=107 // loop_header
                  %s1416 = sphi 0, %s1420
                  %p1417 = scmp.ge.s32.totalorder %s1416, 1
                  %s1421 = sphi %s1363, %s1363
                  %s1422 = sphi %s1370, %s1370
                $region118: #{feed_forward.1} parent=107 // loop_header_branch
                  %1419 = sbr.rel (%p1417) target = $region122
                $region119: #{feed_forward.1} parent=107 // loop_body
                  %v1423 = vld [vmem:[%s1421] sm:%s1414]
                  %1424 = vst [vmem:[%s1422] sm:%s1414] %v1423
                  %v1425 = vld [vmem:[%s1421 + $0x4] sm:%s1414]
                  %1426 = vst [vmem:[%s1422 + $0x8] sm:%s1414] %v1425
                  %v1427 = vld [vmem:[%s1421 + $0x8] sm:%s1414]
                  %1428 = vst [vmem:[%s1422 + $0x10] sm:%s1414] %v1427
                  %v1429 = vld [vmem:[%s1421 + $0xc] sm:%s1414]
                  %1430 = vst [vmem:[%s1422 + $0x18] sm:%s1414] %v1429
                  %v1431 = vld [vmem:[%s1421 + $0x10] sm:%s1414]
                  %1432 = vst [vmem:[%s1422 + $0x20] sm:%s1414] %v1431
                  %v1433 = vld [vmem:[%s1421 + $0x14] sm:%s1414]
                  %1434 = vst [vmem:[%s1422 + $0x28] sm:%s1414] %v1433
                  %v1435 = vld [vmem:[%s1421 + $0x18] sm:%s1414]
                  %1436 = vst [vmem:[%s1422 + $0x30] sm:%s1414] %v1435
                  %v1437 = vld [vmem:[%s1421 + $0x1c] sm:%s1414]
                  %1438 = vst [vmem:[%s1422 + $0x38] sm:%s1414] %v1437
                $region120: #{feed_forward.1} parent=107 // loop_footer
                  %s1420 = sadd.s32 1, %s1416
                $region121: #{feed_forward.1} parent=107 // loop_footer_branch
                  %1415 = sbr.rel target = $region117
                $region122: #{feed_forward.1} parent=107 // loop_exit
                  _
              $region108: #{feed_forward.1} parent=92 // pred_fallthru
                _
            $region93: #{feed_forward.1} parent=88 // pred_fallthru
              _
            // Predicated region
            $region94: #{feed_forward.1} parent=88 // pred_check
              _
            $region95: #{feed_forward.1} parent=88 // pred_check_branch
              %1376 = sbr.rel (0) target = $region97
            $region96: #{feed_forward.1} parent=88 // pred_region
              %s1378 = ssub.s32 16, 1
              loop: start=0, step=1, limit=1
              $region98: #{feed_forward.1} parent=96 // loop_pre_header
                _
              $region99: #{feed_forward.1} parent=96 // loop_header
                %s1380 = sphi 0, %s1384
                %p1381 = scmp.ge.s32.totalorder %s1380, 1
                %s1385 = sphi %s1363, %s1363
                %s1386 = sphi %s1370, %s1370
              $region100: #{feed_forward.1} parent=96 // loop_header_branch
                %1383 = sbr.rel (%p1381) target = $region104
              $region101: #{feed_forward.1} parent=96 // loop_body
                %v1387 = vld [vmem:[%s1385] sm:%s1378]
                %1388 = vst [vmem:[%s1386] sm:%s1378] %v1387
                %v1389 = vld [vmem:[%s1385 + $0x4] sm:%s1378]
                %1390 = vst [vmem:[%s1386 + $0x8] sm:%s1378] %v1389
                %v1391 = vld [vmem:[%s1385 + $0x8] sm:%s1378]
                %1392 = vst [vmem:[%s1386 + $0x10] sm:%s1378] %v1391
                %v1393 = vld [vmem:[%s1385 + $0xc] sm:%s1378]
                %1394 = vst [vmem:[%s1386 + $0x18] sm:%s1378] %v1393
                %v1395 = vld [vmem:[%s1385 + $0x10] sm:%s1378]
                %1396 = vst [vmem:[%s1386 + $0x20] sm:%s1378] %v1395
                %v1397 = vld [vmem:[%s1385 + $0x14] sm:%s1378]
                %1398 = vst [vmem:[%s1386 + $0x28] sm:%s1378] %v1397
                %v1399 = vld [vmem:[%s1385 + $0x18] sm:%s1378]
                %1400 = vst [vmem:[%s1386 + $0x30] sm:%s1378] %v1399
                %v1401 = vld [vmem:[%s1385 + $0x1c] sm:%s1378]
                %1402 = vst [vmem:[%s1386 + $0x38] sm:%s1378] %v1401
              $region102: #{feed_forward.1} parent=96 // loop_footer
                %s1384 = sadd.s32 1, %s1380
              $region103: #{feed_forward.1} parent=96 // loop_footer_branch
                %1379 = sbr.rel target = $region99
              $region104: #{feed_forward.1} parent=96 // loop_exit
                _
            $region97: #{feed_forward.1} parent=88 // pred_fallthru
              _
          $region89: #{feed_forward.1} parent=84 // pred_fallthru
            _
          %1439 = vnop
        $region85: #{feed_forward.1} parent=76 // pred_fallthru
          _
      $region77: #{feed_forward.1} parent=5 // pred_fallthru
        _
      %p1440 = scmp.le.s32.totalorder 2, %s11
      // Predicated region
      $region123: #{feed_forward.1} parent=5 // pred_check
        %p1441 = pneg %p1440
      $region124: #{feed_forward.1} parent=5 // pred_check_branch
        %1443 = sbr.rel (%p1441) target = $region126
      $region125: #{feed_forward.1} parent=5 // pred_region
        %s1444 = ssub.s32 %s11, 2
        // Predicated region
        $region127: #{feed_forward.1} parent=125 // pred_check
          %p1445 = pneg %p166
        $region128: #{feed_forward.1} parent=125 // pred_check_branch
          %1447 = sbr.rel (%p1445) target = $region130
        $region129: #{feed_forward.1} parent=125 // pred_region
          %s1448 = sand.u32 %s151, 1
          %s1449 = sand.u32 %s151, 1
          %s1450 = smul.addr %s1449, 32
          %s1451 = scalar_lea.vmem [#allocation3], %s1450
        $region130: #{feed_forward.1} parent=125 // pred_fallthru
          _
      $region126: #{feed_forward.1} parent=5 // pred_fallthru
        _
    $region6: #{feed_forward.1} parent=1 // loop_footer
      %s15 = sadd.s32 1, %s11
    $region7: #{feed_forward.1} parent=1 // loop_footer_branch
      %10 = sbr.rel target = $region3
    $region8: #{feed_forward.1} parent=1 // loop_exit
      _

</llo_original>
